<compile_context>
chip_gen: v5e
topology: v5e:2x2
jax: 0.10.0
libtpu: 0.0.40
codegen_flags: <defaults>
</compile_context>

<pallas_src>
import functools

import jax
import jax.numpy as jnp
from jax.experimental import pallas as pl
from jax.experimental.pallas import tpu as pltpu


def _head_block_kernel(x_ref, w_ref, bias_ref, mask_ref, o_ref, slab_ref,
                       *, lane_shifts):
    """Conv3x3(pad=1) + folded BN + ReLU for Nb batch elements per grid step.

    x_ref    : (Nb, Cin, HW)       flattened-NCHW activations (lane-dense)
    w_ref    : (Cout, 9*Cin)       conv weights with BN scale folded in;
                                   column = t*Cin + cin, tap t = kh*3 + kw
    bias_ref : (Cout, 1)           folded BN bias (f32)
    mask_ref : (9, HW)             per-tap boundary mask (1.0 valid / 0.0 halo)
    o_ref    : (Nb, Cout, HW)      flattened-NCHW output (lane-dense)
    slab_ref : (9*Cin, Nb*HW)      lane-dense im2col slab scratch
    """
    Nb, Cin, HW = x_ref.shape

    # NOTE: slab row order (tap-major, channel-minor) must stay in lockstep with
    # the wrapper's weight column order; both derive from tap index t = kh*3 + kw.
    # Static unroll: Nb is capped small by the wrapper; each (nb, t) iteration ends
    # in a slab store, so little state stays live across iterations.
    for nb in range(Nb):
        x_nb = x_ref[nb]                                     # (Cin, HW)
        for t, s in enumerate(lane_shifts):
            # Lane rotation (XLU) brings tap (kh, kw) to its output position;
            # the precomputed mask zeroes the columns/rows that wrapped (halo).
            shifted = pltpu.roll(x_nb, shift=s, axis=1) if s else x_nb
            tap = shifted * mask_ref[t:t + 1, :]             # (Cin, HW)
            slab_ref[t * Cin:(t + 1) * Cin, nb * HW:(nb + 1) * HW] = tap

    # One MXU contraction over K = 9*Cin for all Nb elements: (Cout, Nb*HW).
    acc = jnp.dot(w_ref[...], slab_ref[...],
                  preferred_element_type=jnp.float32)

    # Folded-BN bias + ReLU (f32 epilogue), then lane-dense stores per element.
    y = jnp.maximum(acc + bias_ref[...], 0.0)
    for nb in range(Nb):
        o_ref[nb] = y[:, nb * HW:(nb + 1) * HW].astype(o_ref.dtype)


def _pick_batch_block(n, cap=8):
    """Largest divisor of n that is <= cap and leaves >= 2 grid steps when n >= 2."""
    target = n if n == 1 else min(cap, max(1, n // 2))
    nb = target
    while n % nb:
        nb -= 1
    return nb


def head_block(x_nchw, w_oihw, bn_gamma, bn_beta, bn_mean, bn_var,
               conv_bias, *, eps=1e-5, compute_dtype=None):
    """Conv2d(3x3, stride=1, pad=1) + BatchNorm2d(eval) + ReLU.

    Takes / returns PyTorch-native NCHW.  `compute_dtype=jnp.bfloat16` is the
    recommended knob on v6e/v7x (halves DMA bytes; accumulation stays f32).
    """
    N, Cin, H, W = x_nchw.shape
    Cout, _, KH, KW = w_oihw.shape
    assert (KH, KW) == (3, 3)
    HW = H * W
    n_tap = KH * KW
    cdt = jnp.dtype(compute_dtype) if compute_dtype is not None else x_nchw.dtype

    # Fold BN affine (inference stats) + conv bias; fold the scale into the weights.
    scale = bn_gamma / jnp.sqrt(bn_var + eps)                      # (Cout,)
    bias = (conv_bias - bn_mean) * scale + bn_beta                 # (Cout,)
    bias2d = bias.reshape(Cout, 1).astype(jnp.float32)

    # Weights OIHW -> (Cout, kh, kw, Cin) -> (Cout, 9*Cin); column = t*Cin + cin,
    # tap t = kh*3 + kw — must match the in-kernel slab row order.
    w_cols = jnp.transpose(w_oihw, (0, 2, 3, 1)).reshape(Cout, n_tap * Cin)
    w_folded = (w_cols * scale[:, None]).astype(cdt)

    # Flattened NCHW activations: metadata-only reshape, no HBM relayout pass.
    x_flat = x_nchw.reshape(N, Cin, HW).astype(cdt)

    # Per-tap boundary masks over the flattened HW axis and the matching static
    # lane-roll amounts (roll by -((kh-1)*W + (kw-1)) mod HW).
    hh = jnp.repeat(jnp.arange(H), W)
    ww = jnp.tile(jnp.arange(W), H)
    masks, shifts = [], []
    for t in range(n_tap):
        dh, dw = t // KW - 1, t % KW - 1
        masks.append((hh + dh >= 0) & (hh + dh < H) &
                     (ww + dw >= 0) & (ww + dw < W))
        shifts.append((-(dh * W + dw)) % HW)
    tap_masks = jnp.stack(masks).astype(cdt)                       # (9, HW)
    lane_shifts = tuple(shifts)

    Nb = _pick_batch_block(N)
    grid = (N // Nb,)

    flops = 2 * N * HW * Cout * n_tap * Cin
    bytes_accessed = int(x_flat.size * x_flat.dtype.itemsize
                         + w_folded.size * w_folded.dtype.itemsize
                         + tap_masks.size * tap_masks.dtype.itemsize
                         + bias2d.size * 4
                         + N * Cout * HW * jnp.dtype(x_nchw.dtype).itemsize)

    kernel = functools.partial(_head_block_kernel, lane_shifts=lane_shifts)

    out_flat = pl.pallas_call(
        kernel,
        out_shape=jax.ShapeDtypeStruct((N, Cout, HW), x_nchw.dtype),
        grid_spec=pltpu.PrefetchScalarGridSpec(
            num_scalar_prefetch=0,
            grid=grid,
            in_specs=[
                pl.BlockSpec((Nb, Cin, HW), lambda i: (i, 0, 0)),
                # Constant index_maps -> weights / bias / masks stay resident.
                pl.BlockSpec((Cout, n_tap * Cin), lambda i: (0, 0)),
                pl.BlockSpec((Cout, 1), lambda i: (0, 0)),
                pl.BlockSpec((n_tap, HW), lambda i: (0, 0)),
            ],
            out_specs=pl.BlockSpec((Nb, Cout, HW), lambda i: (i, 0, 0)),
            scratch_shapes=[pltpu.VMEM((n_tap * Cin, Nb * HW), cdt)],
        ),
        compiler_params=pltpu.CompilerParams(
            dimension_semantics=("parallel",),
            vmem_limit_bytes=32 * 1024 * 1024),
        cost_estimate=pl.CostEstimate(flops=flops, transcendentals=0,
                                      bytes_accessed=bytes_accessed),
    )(x_flat, w_folded, bias2d, tap_masks)

    # (N, Cout, H*W) -> (N, Cout, H, W): metadata-only reshape, PyTorch NCHW.
    return out_flat.reshape(N, Cout, H, W)


def _reference(x_nchw, w_oihw, bn_gamma, bn_beta, bn_mean, bn_var,
               conv_bias, eps=1e-5):
    """Literal module semantics: Conv2d -> bias -> BatchNorm2d(eval) -> ReLU."""
    w_hwio = jnp.transpose(w_oihw, (2, 3, 1, 0))
    y = jax.lax.conv_general_dilated(
        x_nchw.astype(jnp.float32), w_hwio.astype(jnp.float32),
        window_strides=(1, 1), padding="SAME",
        dimension_numbers=("NCHW", "HWIO", "NCHW"))
    y = y + conv_bias.reshape(1, -1, 1, 1)
    scale = (bn_gamma / jnp.sqrt(bn_var + eps)).reshape(1, -1, 1, 1)
    y = (y - bn_mean.reshape(1, -1, 1, 1)) * scale + bn_beta.reshape(1, -1, 1, 1)
    return jnp.maximum(y, 0.0)


if __name__ == "__main__":
    key = jax.random.PRNGKey(0)
    k_x, k_w = jax.random.split(key)

    N, Cin, H, W = 2, 4, 16, 16
    Cout = 8

    # PyTorch-native NCHW input.
    x_nchw = jax.random.normal(k_x, (N, Cin, H, W), dtype=jnp.float32)

    # Deterministic parameter init matching _init_weights():
    #   Conv2d: kaiming_normal_(mode='fan_out', relu) -> std = sqrt(2/(Cout*kh*kw)),
    #           bias = 0.   BatchNorm2d: gamma = 1, beta = 0 (mean = 0, var = 1).
    fan_out = Cout * 3 * 3
    std = (2.0 / fan_out) ** 0.5
    w_oihw = jax.random.normal(k_w, (Cout, Cin, 3, 3), dtype=jnp.float32) * std
    conv_bias = jnp.zeros((Cout,), dtype=jnp.float32)
    bn_gamma = jnp.ones((Cout,), dtype=jnp.float32)
    bn_beta = jnp.zeros((Cout,), dtype=jnp.float32)
    bn_mean = jnp.zeros((Cout,), dtype=jnp.float32)
    bn_var = jnp.ones((Cout,), dtype=jnp.float32)

    out = head_block(x_nchw, w_oihw, bn_gamma, bn_beta, bn_mean, bn_var,
                     conv_bias)
    out = jax.block_until_ready(out)

    ref = _reference(x_nchw, w_oihw, bn_gamma, bn_beta, bn_mean, bn_var,
                     conv_bias)
    assert out.shape == (N, Cout, H, W)
    # TPU matmuls/convs at default precision run bf16-class MXU passes and the BN
    # scale is folded into the kernel's weights, so agreement with the separate
    # conv->BN reference is bf16-level, not bit-exact f32.
    assert jnp.allclose(out, ref, atol=1e-2, rtol=1e-2), \
        float(jnp.max(jnp.abs(out - ref)))

    print("KERNEL_OK")
</pallas_src>

<mosaic_0001>
module attributes {stable_mosaic.version = 11 : i64} {
  func.func @_head_block_kernel(%arg0: i32, %arg1: memref<1x4x256xf32, #tpu.memory_space<vmem>>, %arg2: memref<8x36xf32, #tpu.memory_space<vmem>>, %arg3: memref<8x1xf32, #tpu.memory_space<vmem>>, %arg4: memref<9x256xf32, #tpu.memory_space<vmem>>, %arg5: memref<1x8x256xf32, #tpu.memory_space<vmem>>, %arg6: memref<36x256xf32, #tpu.memory_space<vmem>>) attributes {dimension_semantics = [#tpu.dimension_semantics<parallel>], iteration_bounds = array<i64: 2>, scalar_prefetch = 0 : i64, scratch_operands = 1 : i64, tpu.core_type = #tpu.core_type<tc>, window_params = [{transform_indices = @transform_0, window_bounds = array<i64: 1, 4, 256>}, {pipeline_mode = #tpu.pipeline_mode<synchronous>, transform_indices = @transform_1, window_bounds = array<i64: 8, 36>}, {pipeline_mode = #tpu.pipeline_mode<synchronous>, transform_indices = @transform_2, window_bounds = array<i64: 8, 1>}, {pipeline_mode = #tpu.pipeline_mode<synchronous>, transform_indices = @transform_3, window_bounds = array<i64: 9, 256>}, {transform_indices = @transform_4, window_bounds = array<i64: 1, 8, 256>}]} {
    %c0 = arith.constant 0 : index
    %c0_0 = arith.constant 0 : index
    %c0_1 = arith.constant 0 : index
    %0 = vector.load %arg1[%c0, %c0_0, %c0_1] : memref<1x4x256xf32, #tpu.memory_space<vmem>>, vector<1x4x256xf32>
    %1 = vector.shape_cast %0 : vector<1x4x256xf32> to vector<4x256xf32>
    %c17_i32 = arith.constant 17 : i32
    %2 = tpu.dynamic_rotate %1 by %c17_i32 dim 1 : vector<4x256xf32>, i32 -> vector<4x256xf32>
    %c0_2 = arith.constant 0 : index
    %c0_3 = arith.constant 0 : index
    %3 = vector.load %arg4[%c0_2, %c0_3] : memref<9x256xf32, #tpu.memory_space<vmem>>, vector<1x256xf32>
    %4 = vector.broadcast %3 : vector<1x256xf32> to vector<4x256xf32>
    %5 = arith.mulf %2, %4 : vector<4x256xf32>
    %c0_4 = arith.constant 0 : index
    %c0_5 = arith.constant 0 : index
    %6 = vector.load %arg6[%c0_4, %c0_5] : memref<36x256xf32, #tpu.memory_space<vmem>>, vector<4x256xf32>
    tpu.vector_store %arg6[%c0_4, %c0_5], %5 {strides = array<i32>} : memref<36x256xf32, #tpu.memory_space<vmem>>, vector<4x256xf32>,
    %c16_i32 = arith.constant 16 : i32
    %7 = tpu.dynamic_rotate %1 by %c16_i32 dim 1 : vector<4x256xf32>, i32 -> vector<4x256xf32>
    %c1 = arith.constant 1 : index
    %c0_6 = arith.constant 0 : index
    %8 = vector.load %arg4[%c1, %c0_6] : memref<9x256xf32, #tpu.memory_space<vmem>>, vector<1x256xf32>
    %9 = vector.broadcast %8 : vector<1x256xf32> to vector<4x256xf32>
    %10 = arith.mulf %7, %9 : vector<4x256xf32>
    %c4 = arith.constant 4 : index
    %c0_7 = arith.constant 0 : index
    %11 = vector.load %arg6[%c4, %c0_7] : memref<36x256xf32, #tpu.memory_space<vmem>>, vector<4x256xf32>
    tpu.vector_store %arg6[%c4, %c0_7], %10 {strides = array<i32>} : memref<36x256xf32, #tpu.memory_space<vmem>>, vector<4x256xf32>,
    %c15_i32 = arith.constant 15 : i32
    %12 = tpu.dynamic_rotate %1 by %c15_i32 dim 1 : vector<4x256xf32>, i32 -> vector<4x256xf32>
    %c2 = arith.constant 2 : index
    %c0_8 = arith.constant 0 : index
    %13 = vector.load %arg4[%c2, %c0_8] : memref<9x256xf32, #tpu.memory_space<vmem>>, vector<1x256xf32>
    %14 = vector.broadcast %13 : vector<1x256xf32> to vector<4x256xf32>
    %15 = arith.mulf %12, %14 : vector<4x256xf32>
    %c8 = arith.constant 8 : index
    %c0_9 = arith.constant 0 : index
    %16 = vector.load %arg6[%c8, %c0_9] : memref<36x256xf32, #tpu.memory_space<vmem>>, vector<4x256xf32>
    tpu.vector_store %arg6[%c8, %c0_9], %15 {strides = array<i32>} : memref<36x256xf32, #tpu.memory_space<vmem>>, vector<4x256xf32>,
    %c1_i32 = arith.constant 1 : i32
    %17 = tpu.dynamic_rotate %1 by %c1_i32 dim 1 : vector<4x256xf32>, i32 -> vector<4x256xf32>
    %c3 = arith.constant 3 : index
    %c0_10 = arith.constant 0 : index
    %18 = vector.load %arg4[%c3, %c0_10] : memref<9x256xf32, #tpu.memory_space<vmem>>, vector<1x256xf32>
    %19 = vector.broadcast %18 : vector<1x256xf32> to vector<4x256xf32>
    %20 = arith.mulf %17, %19 : vector<4x256xf32>
    %c12 = arith.constant 12 : index
    %c0_11 = arith.constant 0 : index
    %21 = vector.load %arg6[%c12, %c0_11] : memref<36x256xf32, #tpu.memory_space<vmem>>, vector<4x256xf32>
    tpu.vector_store %arg6[%c12, %c0_11], %20 {strides = array<i32>} : memref<36x256xf32, #tpu.memory_space<vmem>>, vector<4x256xf32>,
    %c4_12 = arith.constant 4 : index
    %c0_13 = arith.constant 0 : index
    %22 = vector.load %arg4[%c4_12, %c0_13] : memref<9x256xf32, #tpu.memory_space<vmem>>, vector<1x256xf32>
    %23 = vector.broadcast %22 : vector<1x256xf32> to vector<4x256xf32>
    %24 = arith.mulf %1, %23 : vector<4x256xf32>
    %c16 = arith.constant 16 : index
    %c0_14 = arith.constant 0 : index
    %25 = vector.load %arg6[%c16, %c0_14] : memref<36x256xf32, #tpu.memory_space<vmem>>, vector<4x256xf32>
    tpu.vector_store %arg6[%c16, %c0_14], %24 {strides = array<i32>} : memref<36x256xf32, #tpu.memory_space<vmem>>, vector<4x256xf32>,
    %c255_i32 = arith.constant 255 : i32
    %26 = tpu.dynamic_rotate %1 by %c255_i32 dim 1 : vector<4x256xf32>, i32 -> vector<4x256xf32>
    %c5 = arith.constant 5 : index
    %c0_15 = arith.constant 0 : index
    %27 = vector.load %arg4[%c5, %c0_15] : memref<9x256xf32, #tpu.memory_space<vmem>>, vector<1x256xf32>
    %28 = vector.broadcast %27 : vector<1x256xf32> to vector<4x256xf32>
    %29 = arith.mulf %26, %28 : vector<4x256xf32>
    %c20 = arith.constant 20 : index
    %c0_16 = arith.constant 0 : index
    %30 = vector.load %arg6[%c20, %c0_16] : memref<36x256xf32, #tpu.memory_space<vmem>>, vector<4x256xf32>
    tpu.vector_store %arg6[%c20, %c0_16], %29 {strides = array<i32>} : memref<36x256xf32, #tpu.memory_space<vmem>>, vector<4x256xf32>,
    %c241_i32 = arith.constant 241 : i32
    %31 = tpu.dynamic_rotate %1 by %c241_i32 dim 1 : vector<4x256xf32>, i32 -> vector<4x256xf32>
    %c6 = arith.constant 6 : index
    %c0_17 = arith.constant 0 : index
    %32 = vector.load %arg4[%c6, %c0_17] : memref<9x256xf32, #tpu.memory_space<vmem>>, vector<1x256xf32>
    %33 = vector.broadcast %32 : vector<1x256xf32> to vector<4x256xf32>
    %34 = arith.mulf %31, %33 : vector<4x256xf32>
    %c24 = arith.constant 24 : index
    %c0_18 = arith.constant 0 : index
    %35 = vector.load %arg6[%c24, %c0_18] : memref<36x256xf32, #tpu.memory_space<vmem>>, vector<4x256xf32>
    tpu.vector_store %arg6[%c24, %c0_18], %34 {strides = array<i32>} : memref<36x256xf32, #tpu.memory_space<vmem>>, vector<4x256xf32>,
    %c240_i32 = arith.constant 240 : i32
    %36 = tpu.dynamic_rotate %1 by %c240_i32 dim 1 : vector<4x256xf32>, i32 -> vector<4x256xf32>
    %c7 = arith.constant 7 : index
    %c0_19 = arith.constant 0 : index
    %37 = vector.load %arg4[%c7, %c0_19] : memref<9x256xf32, #tpu.memory_space<vmem>>, vector<1x256xf32>
    %38 = vector.broadcast %37 : vector<1x256xf32> to vector<4x256xf32>
    %39 = arith.mulf %36, %38 : vector<4x256xf32>
    %c28 = arith.constant 28 : index
    %c0_20 = arith.constant 0 : index
    %40 = vector.load %arg6[%c28, %c0_20] : memref<36x256xf32, #tpu.memory_space<vmem>>, vector<4x256xf32>
    tpu.vector_store %arg6[%c28, %c0_20], %39 {strides = array<i32>} : memref<36x256xf32, #tpu.memory_space<vmem>>, vector<4x256xf32>,
    %c239_i32 = arith.constant 239 : i32
    %41 = tpu.dynamic_rotate %1 by %c239_i32 dim 1 : vector<4x256xf32>, i32 -> vector<4x256xf32>
    %c8_21 = arith.constant 8 : index
    %c0_22 = arith.constant 0 : index
    %42 = vector.load %arg4[%c8_21, %c0_22] : memref<9x256xf32, #tpu.memory_space<vmem>>, vector<1x256xf32>
    %43 = vector.broadcast %42 : vector<1x256xf32> to vector<4x256xf32>
    %44 = arith.mulf %41, %43 : vector<4x256xf32>
    %c32 = arith.constant 32 : index
    %c0_23 = arith.constant 0 : index
    %45 = vector.load %arg6[%c32, %c0_23] : memref<36x256xf32, #tpu.memory_space<vmem>>, vector<4x256xf32>
    tpu.vector_store %arg6[%c32, %c0_23], %44 {strides = array<i32>} : memref<36x256xf32, #tpu.memory_space<vmem>>, vector<4x256xf32>,
    %c0_24 = arith.constant 0 : index
    %c0_25 = arith.constant 0 : index
    %46 = vector.load %arg2[%c0_24, %c0_25] : memref<8x36xf32, #tpu.memory_space<vmem>>, vector<8x36xf32>
    %c0_26 = arith.constant 0 : index
    %c0_27 = arith.constant 0 : index
    %47 = vector.load %arg6[%c0_26, %c0_27] : memref<36x256xf32, #tpu.memory_space<vmem>>, vector<36x256xf32>
    %cst = arith.constant dense<0.000000e+00> : vector<8x256xf32>
    %48 = tpu.matmul %46, %47, %cst {dimension_numbers = #tpu.dot_dimension_numbers<[1], [0], [0], [1], [0, 0, 1, 1], [], []>} : vector<8x36xf32>, vector<36x256xf32>, vector<8x256xf32> -> vector<8x256xf32>
    %c0_28 = arith.constant 0 : index
    %c0_29 = arith.constant 0 : index
    %49 = vector.load %arg3[%c0_28, %c0_29] : memref<8x1xf32, #tpu.memory_space<vmem>>, vector<8x1xf32>
    %50 = vector.broadcast %49 : vector<8x1xf32> to vector<8x256xf32>
    %51 = arith.addf %48, %50 : vector<8x256xf32>
    %cst_30 = arith.constant 0.000000e+00 : f32
    %52 = vector.broadcast %cst_30 : f32 to vector<8x256xf32>
    %53 = arith.maximumf %51, %52 : vector<8x256xf32>
    %c0_31 = arith.constant 0 : index
    %c0_32 = arith.constant 0 : index
    %c0_33 = arith.constant 0 : index
    %54 = vector.load %arg5[%c0_31, %c0_32, %c0_33] : memref<1x8x256xf32, #tpu.memory_space<vmem>>, vector<1x8x256xf32>
    %55 = vector.shape_cast %54 : vector<1x8x256xf32> to vector<8x256xf32>
    %56 = vector.shape_cast %53 : vector<8x256xf32> to vector<1x8x256xf32>
    tpu.vector_store %arg5[%c0_31, %c0_32, %c0_33], %56 {strides = array<i32>} : memref<1x8x256xf32, #tpu.memory_space<vmem>>, vector<1x8x256xf32>,
    return
  }
  func.func @transform_0(%arg0: i32) -> (i32, i32, i32) {
    %c0_i32 = arith.constant 0 : i32
    %c0_i32_0 = arith.constant 0 : i32
    %c0_i32_1 = arith.constant 0 : i32
    return %arg0, %c0_i32, %c0_i32_0 : i32, i32, i32
  }
  func.func @transform_1(%arg0: i32) -> (i32, i32) {
    %c0_i32 = arith.constant 0 : i32
    %c0_i32_0 = arith.constant 0 : i32
    %c0_i32_1 = arith.constant 0 : i32
    return %c0_i32, %c0_i32_0 : i32, i32
  }
  func.func @transform_2(%arg0: i32) -> (i32, i32) {
    %c0_i32 = arith.constant 0 : i32
    %c0_i32_0 = arith.constant 0 : i32
    %c0_i32_1 = arith.constant 0 : i32
    return %c0_i32, %c0_i32_0 : i32, i32
  }
  func.func @transform_3(%arg0: i32) -> (i32, i32) {
    %c0_i32 = arith.constant 0 : i32
    %c0_i32_0 = arith.constant 0 : i32
    %c0_i32_1 = arith.constant 0 : i32
    return %c0_i32, %c0_i32_0 : i32, i32
  }
  func.func @transform_4(%arg0: i32) -> (i32, i32, i32) {
    %c0_i32 = arith.constant 0 : i32
    %c0_i32_0 = arith.constant 0 : i32
    %c0_i32_1 = arith.constant 0 : i32
    return %arg0, %c0_i32, %c0_i32_0 : i32, i32, i32
  }
}

</mosaic_0001>

<llo_original>
// kernel: tpu_custom_call.1
$region0: #{tpu_custom_call.1}
  #allocation0 [shape = 'u32[]', space=smem, size = 0x4, offset = 0x4, fixed_abs, tag = 'smem constant byte address 0x4 - core index']
  #allocation1 [shape = 'u32[72,128]{1,0:T(1,128)}', space=vmem, size = 0x9000, scoped, tag = 'internal scratch']
  #allocation2 [shape = 'f32[36,256]{1,0:T(8,128)}', space=vmem, size = 0xa000, scoped, tag = 'scratch operand']
  %s0 = inlined_call_operand.hbm [shape: f32[2,4,256], index: 0, kind: input, shape index: {}]
  %s1 = inlined_call_operand.vmem [shape: f32[8,36], index: 1, kind: input, shape index: {}]
  %s2 = inlined_call_operand.vmem [shape: f32[8,1], index: 2, kind: input, shape index: {}]
  %s3 = inlined_call_operand.hbm [shape: f32[9,256], index: 3, kind: input, shape index: {}]
  %s4 = inlined_call_operand.hbm [shape: f32[2,8,256], index: 4, kind: output, shape index: {}]
  %s5 = sld [smem:[#allocation0]]
  $region57: #{tpu_custom_call.1} parent=0
    _
  %s7 = ssub.s32 1, %s5
  %s8 = scalar_select 0, %s7, %s5
  $region1: #{tpu_custom_call.1} parent=0
    #allocation3 [shape = 'u8[8192]{0}', space=vmem, size = 0x2000, scoped, tag = 'input window, operand 0']
    #allocation4 [shape = 's32[2]{0}', space=sflag, size = 0x8, scoped, tag = 'scoped memory for tpu_custom_call.1']
    #allocation5 [shape = 's32[2]{0}', space=sflag, size = 0x8, scoped, tag = 'scoped memory for tpu_custom_call.1']
    #allocation6 [shape = 'u8[16384]{0}', space=vmem, size = 0x4000, scoped, tag = 'input window, operand 3, single buffered']
    #allocation7 [shape = 's32[1]{0}', space=sflag, size = 0x4, scoped, tag = 'scoped memory for tpu_custom_call.1']
    #allocation8 [shape = 'u8[16384]{0}', space=vmem, size = 0x4000, scoped, tag = 'output window, operand 0']
    %9 = vsyncpa [#allocation4], 0
    %s10 = scalar_lea.sflag [#allocation4], 1
    %11 = vsyncpa %s10, 0
    %12 = vsyncpa [#allocation7], 0
    %13 = vsyncpa [#allocation5], 0
    %s14 = scalar_lea.sflag [#allocation5], 1
    %15 = vsyncpa %s14, 0
    loop: start=0, step=1, limit=4
    $region2: #{tpu_custom_call.1} parent=1 // loop_pre_header
      _
    $region3: #{tpu_custom_call.1} parent=1 // loop_header
      %s17 = sphi 0, %s21
      %p18 = scmp.ge.s32.totalorder %s17, 4
      %s27 = sphi 0, %s29
      %s30 = sphi 0, %s27
      %s31 = sphi 0, %s30
      %s47 = sphi 0, %s31
      %s51 = sphi 0, %s51
      %s53 = sphi 0, %s51
      %s54 = sphi 0, %s53
      %s68 = sphi 0, %s54
      %s72 = sphi 0, %s72
      %s74 = sphi 0, %s72
      %s75 = sphi 0, %s74
      %s89 = sphi 0, %s75
      %s93 = sphi 0, %s93
      %s95 = sphi 0, %s93
      %s96 = sphi 0, %s95
      %s110 = sphi 0, %s96
      %s116 = sphi 0, %s118
      %s119 = sphi 0, %s116
      %s120 = sphi 0, %s119
      %s136 = sphi 0, %s120
    $region4: #{tpu_custom_call.1} parent=1 // loop_header_branch
      %20 = sbr.rel (%p18) target = $region8
    $region5: #{tpu_custom_call.1} parent=1 // loop_body
      %s22 = ssub.s32 %s17, 1
      %s23 = ssub.s32 %s17, 2
      %s24 = sadd.s32 %s17, 1
      %s25 = ssub.s32 %s17, %s24
      %p26 = scmp.eq.s32.totalorder %s25, 0
      %s28 = sadd.s32 %s27, 1
      %s29 = scalar_select %p26, %s27, %s28
      %p32 = pneg %p26
      %p33 = scmp.eq.s32.totalorder %s17, 1
      %p34 = por %p32, %p33
      %p35 = scmp.ne.s32.totalorder %s27, %s30
      %p36 = scmp.eq.s32.totalorder %s17, 0
      %p37 = por %p35, %p36
      %p38 = scmp.ne.s32.totalorder %s27, %s30
      %p39 = scmp.eq.s32.totalorder %s22, 1
      %p40 = por %p38, %p39
      %p41 = scmp.ne.s32.totalorder %s30, %s31
      %p42 = scmp.eq.s32.totalorder %s22, 0
      %p43 = por %p41, %p42
      %p44 = scmp.ne.s32.totalorder %s30, %s31
      %p45 = scmp.eq.s32.totalorder %s23, 1
      %p46 = por %p44, %p45
      %p48 = scmp.ne.s32.totalorder %s31, %s47
      %p49 = scmp.eq.s32.totalorder %s23, 0
      %p50 = por %p48, %p49
      %s52 = sadd.s32 %s51, 1
      %p55 = scmp.eq.s32.totalorder %s17, 1
      %p56 = scmp.ne.s32.totalorder %s51, %s53
      %p57 = scmp.eq.s32.totalorder %s17, 0
      %p58 = por %p56, %p57
      %p59 = scmp.ne.s32.totalorder %s51, %s53
      %p60 = scmp.eq.s32.totalorder %s22, 1
      %p61 = por %p59, %p60
      %p62 = scmp.ne.s32.totalorder %s53, %s54
      %p63 = scmp.eq.s32.totalorder %s22, 0
      %p64 = por %p62, %p63
      %p65 = scmp.ne.s32.totalorder %s53, %s54
      %p66 = scmp.eq.s32.totalorder %s23, 1
      %p67 = por %p65, %p66
      %p69 = scmp.ne.s32.totalorder %s54, %s68
      %p70 = scmp.eq.s32.totalorder %s23, 0
      %p71 = por %p69, %p70
      %s73 = sadd.s32 %s72, 1
      %p76 = scmp.eq.s32.totalorder %s17, 1
      %p77 = scmp.ne.s32.totalorder %s72, %s74
      %p78 = scmp.eq.s32.totalorder %s17, 0
      %p79 = por %p77, %p78
      %p80 = scmp.ne.s32.totalorder %s72, %s74
      %p81 = scmp.eq.s32.totalorder %s22, 1
      %p82 = por %p80, %p81
      %p83 = scmp.ne.s32.totalorder %s74, %s75
      %p84 = scmp.eq.s32.totalorder %s22, 0
      %p85 = por %p83, %p84
      %p86 = scmp.ne.s32.totalorder %s74, %s75
      %p87 = scmp.eq.s32.totalorder %s23, 1
      %p88 = por %p86, %p87
      %p90 = scmp.ne.s32.totalorder %s75, %s89
      %p91 = scmp.eq.s32.totalorder %s23, 0
      %p92 = por %p90, %p91
      %s94 = sadd.s32 %s93, 1
      %p97 = scmp.eq.s32.totalorder %s17, 1
      %p98 = scmp.ne.s32.totalorder %s93, %s95
      %p99 = scmp.eq.s32.totalorder %s17, 0
      %p100 = por %p98, %p99
      %p101 = scmp.ne.s32.totalorder %s93, %s95
      %p102 = scmp.eq.s32.totalorder %s22, 1
      %p103 = por %p101, %p102
      %p104 = scmp.ne.s32.totalorder %s95, %s96
      %p105 = scmp.eq.s32.totalorder %s22, 0
      %p106 = por %p104, %p105
      %p107 = scmp.ne.s32.totalorder %s95, %s96
      %p108 = scmp.eq.s32.totalorder %s23, 1
      %p109 = por %p107, %p108
      %p111 = scmp.ne.s32.totalorder %s96, %s110
      %p112 = scmp.eq.s32.totalorder %s23, 0
      %p113 = por %p111, %p112
      %s114 = ssub.s32 %s17, %s24
      %p115 = scmp.eq.s32.totalorder %s114, 0
      %s117 = sadd.s32 %s116, 1
      %s118 = scalar_select %p115, %s116, %s117
      %p121 = pneg %p115
      %p122 = scmp.eq.s32.totalorder %s17, 1
      %p123 = por %p121, %p122
      %p124 = scmp.ne.s32.totalorder %s116, %s119
      %p125 = scmp.eq.s32.totalorder %s17, 0
      %p126 = por %p124, %p125
      %p127 = scmp.ne.s32.totalorder %s116, %s119
      %p128 = scmp.eq.s32.totalorder %s22, 1
      %p129 = por %p127, %p128
      %p130 = scmp.ne.s32.totalorder %s119, %s120
      %p131 = scmp.eq.s32.totalorder %s22, 0
      %p132 = por %p130, %p131
      %p133 = scmp.ne.s32.totalorder %s119, %s120
      %p134 = scmp.eq.s32.totalorder %s23, 1
      %p135 = por %p133, %p134
      %p137 = scmp.ne.s32.totalorder %s120, %s136
      %p138 = scmp.eq.s32.totalorder %s23, 0
      %p139 = por %p137, %p138
      %p140 = scmp.le.s32.totalorder 1, %s17
      %p141 = scmp.lt.s32.totalorder %s17, 3
      %p142 = pnand %p140, %p141
      %p143 = pneg %p142
      // Predicated region
      $region9: #{tpu_custom_call.1} parent=5 // pred_check
        _
      $region10: #{tpu_custom_call.1} parent=5 // pred_check_branch
        %145 = sbr.rel (%p142) target = $region12
      $region11: #{tpu_custom_call.1} parent=5 // pred_region
        %s146 = ssub.s32 %s17, 1
        // Predicated region
        $region13: #{tpu_custom_call.1} parent=11 // pred_check
          %p147 = pneg %p64
        $region14: #{tpu_custom_call.1} parent=11 // pred_check_branch
          %149 = sbr.rel (%p147) target = $region16
        $region15: #{tpu_custom_call.1} parent=11 // pred_region
          _
        $region16: #{tpu_custom_call.1} parent=11 // pred_fallthru
          _
        // Predicated region
        $region17: #{tpu_custom_call.1} parent=11 // pred_check
          %p150 = pneg %p85
        $region18: #{tpu_custom_call.1} parent=11 // pred_check_branch
          %152 = sbr.rel (%p150) target = $region20
        $region19: #{tpu_custom_call.1} parent=11 // pred_region
          _
        $region20: #{tpu_custom_call.1} parent=11 // pred_fallthru
          _
        // Predicated region
        $region21: #{tpu_custom_call.1} parent=11 // pred_check
          %p153 = pneg %p106
        $region22: #{tpu_custom_call.1} parent=11 // pred_check_branch
          %155 = sbr.rel (%p153) target = $region24
        $region23: #{tpu_custom_call.1} parent=11 // pred_region
          %157 = vsyncadd [#allocation7], 0
          %s158 = sshll.u32 %s3, 4
          %s159 = int_to_ptr.hbm [resolvable:$true] %s158
          %s160 = sshll.u32 [#allocation6], 4
          %s161 = int_to_ptr.vmem [resolvable:$true] %s160
          %166 = dma.hbm_to_vmem [thread:$0]  %s159, 512, %s161, [#allocation7], 256, 256, 16
        $region24: #{tpu_custom_call.1} parent=11 // pred_fallthru
          _
      $region12: #{tpu_custom_call.1} parent=5 // pred_fallthru
        _
      %p167 = scmp.lt.s32.totalorder %s17, 2
      // Predicated region
      $region25: #{tpu_custom_call.1} parent=5 // pred_check
        %p168 = pneg %p167
      $region26: #{tpu_custom_call.1} parent=5 // pred_check_branch
        %170 = sbr.rel (%p168) target = $region28
      $region27: #{tpu_custom_call.1} parent=5 // pred_region
        // Predicated region
        $region29: #{tpu_custom_call.1} parent=27 // pred_check
          %p171 = pneg %p37
        $region30: #{tpu_custom_call.1} parent=27 // pred_check_branch
          %173 = sbr.rel (%p171) target = $region32
        $region31: #{tpu_custom_call.1} parent=27 // pred_region
          %s174 = sand.u32 %s27, 1
          %s175 = scalar_lea.sflag [#allocation4], %s174
          %s176 = sand.u32 %s27, 1
          %s177 = smul.addr %s176, 8
          %s178 = scalar_lea.vmem [#allocation3], %s177
          %180 = vsyncadd %s175, 0
          %s181 = smul.addr %s17, 2
          %s182 = smul.addr %s181, 4
          %s183 = scalar_lea.hbm %s0, %s182
          %s185 = sshll.u32 %s183, 4
          %s186 = int_to_ptr.hbm [resolvable:$true] %s185
          %s187 = sshll.u32 %s178, 4
          %s188 = int_to_ptr.vmem [resolvable:$true] %s187
          %190 = dma.hbm_to_vmem [thread:$0]  %s186, 128, %s188, %s175
        $region32: #{tpu_custom_call.1} parent=27 // pred_fallthru
          _
      $region28: #{tpu_custom_call.1} parent=5 // pred_fallthru
        _
      %p191 = scmp.le.s32.totalorder 1, %s17
      %p192 = scmp.lt.s32.totalorder %s17, 3
      %p193 = pnand %p191, %p192
      %p194 = pneg %p193
      // Predicated region
      $region33: #{tpu_custom_call.1} parent=5 // pred_check
        _
      $region34: #{tpu_custom_call.1} parent=5 // pred_check_branch
        %196 = sbr.rel (%p193) target = $region36
      $region35: #{tpu_custom_call.1} parent=5 // pred_region
        %s197 = ssub.s32 %s17, 1
        %s198 = sand.u32 %s30, 1
        %s199 = scalar_lea.sflag [#allocation4], %s198
        %s200 = sand.u32 %s30, 1
        %s201 = smul.addr %s200, 8
        %s202 = scalar_lea.vmem [#allocation3], %s201
        // Predicated region
        $region37: #{tpu_custom_call.1} parent=35 // pred_check
          %p203 = pneg %p43
        $region38: #{tpu_custom_call.1} parent=35 // pred_check_branch
          %205 = sbr.rel (%p203) target = $region40
        $region39: #{tpu_custom_call.1} parent=35 // pred_region
          %207 = dma.done %s199, 128
        $region40: #{tpu_custom_call.1} parent=35 // pred_fallthru
          _
        // Predicated region
        $region41: #{tpu_custom_call.1} parent=35 // pred_check
          %p208 = pneg %p106
        $region42: #{tpu_custom_call.1} parent=35 // pred_check_branch
          %210 = sbr.rel (%p208) target = $region44
        $region43: #{tpu_custom_call.1} parent=35 // pred_region
          %212 = dma.done [#allocation7], 512
        $region44: #{tpu_custom_call.1} parent=35 // pred_fallthru
          _
        %s213 = sand.u32 %s30, 1
        %s214 = scalar_lea.sflag [#allocation4], %s213
        %s215 = sand.u32 %s30, 1
        %s216 = smul.addr %s215, 8
        %s217 = scalar_lea.vmem [#allocation3], %s216
        %p218 = pneg %p43
        %p219 = pneg %p40
        %p220 = pneg %p64
        %p221 = pneg %p61
        %p222 = pneg %p85
        %p223 = pneg %p82
        %p224 = pneg %p106
        %p225 = pneg %p103
        %p226 = pneg %p132
        %p227 = pneg %p129
        %s228 = sand.u32 %s119, 1
        %s229 = scalar_lea.sflag [#allocation5], %s228
        %s230 = sand.u32 %s119, 1
        %s231 = smul.addr %s230, 16
        %s232 = scalar_lea.vmem [#allocation8], %s231
        %v233 = vld [vmem:[%s202] sm:$0xff]
        %235 = vst [vmem:[#allocation1] ss:$2 sm:$0xff] %v233
        %v236 = vld.sshfl [vmem:[#allocation1] sm:$0xff pattern:$0x75316420]
        %v237 = vld.sshfl [vmem:[#allocation1 + $0x8] sm:$0xff pattern:$0x75316420]
        %240 = vrot.lane.b32.xlu0 %v236, 17
        %v241 = vpop.permute.xlu0 %240
        %242 = vrot.lane.b32.xlu0 %v237, 17
        %v243 = vpop.permute.xlu0 %242
        %v244 = vlaneseq
        %v245 = vand.u32 %v244, 127
        %vm246 = vcmp.lt.s32.totalorder %v245, 17
        %v247 = vsel %vm246, %v241, %v243
        %v248 = vsel %vm246, %v243, %v241
        %v249 = vld [vmem:[#allocation6] ss:$8 sm:$0x3]
        %v251 = vperm.slane %v249, 0
        %v252 = vperm.slane %v249, 1
        %v255 = vmul.f32 %v248, %v251
        %v256 = vmul.f32 %v247, %v252
        %257 = vst [vmem:[#allocation2] sm:$0xf] %v255
        %258 = vst [vmem:[#allocation2 + $0x8] sm:$0xf] %v256
        %259 = vst [vmem:[#allocation1] ss:$2 sm:$0xff] %v233
        %v260 = vld.sshfl [vmem:[#allocation1] sm:$0xff pattern:$0x75316420]
        %v261 = vld.sshfl [vmem:[#allocation1 + $0x8] sm:$0xff pattern:$0x75316420]
        %264 = vrot.lane.b32.xlu0 %v260, 16
        %v265 = vpop.permute.xlu0 %264
        %266 = vrot.lane.b32.xlu0 %v261, 16
        %v267 = vpop.permute.xlu0 %266
        %vm268 = vcmp.lt.s32.totalorder %v245, 16
        %v269 = vsel %vm268, %v265, %v267
        %v270 = vsel %vm268, %v267, %v265
        %s271 = scalar_lea.vmem [#allocation6], 1
        %v272 = vld [vmem:[%s271] ss:$8 sm:$0x3]
        %v274 = vperm.slane %v272, 0
        %v275 = vperm.slane %v272, 1
        %v278 = vmul.f32 %v270, %v274
        %v279 = vmul.f32 %v269, %v275
        %v282 = vrot.slane %v278, 4
        %v283 = vrot.slane %v279, 4
        %286 = vst [vmem:[#allocation2] sm:$0xf0] %v282
        %287 = vst [vmem:[#allocation2 + $0x8] sm:$0xf0] %v283
        %288 = vst [vmem:[#allocation1] ss:$2 sm:$0xff] %v233
        %v289 = vld.sshfl [vmem:[#allocation1] sm:$0xff pattern:$0x75316420]
        %v290 = vld.sshfl [vmem:[#allocation1 + $0x8] sm:$0xff pattern:$0x75316420]
        %293 = vrot.lane.b32.xlu0 %v289, 15
        %v294 = vpop.permute.xlu0 %293
        %295 = vrot.lane.b32.xlu0 %v290, 15
        %v296 = vpop.permute.xlu0 %295
        %vm297 = vcmp.lt.s32.totalorder %v245, 15
        %v298 = vsel %vm297, %v294, %v296
        %v299 = vsel %vm297, %v296, %v294
        %s300 = scalar_lea.vmem [#allocation6], 2
        %v301 = vld [vmem:[%s300] ss:$8 sm:$0x3]
        %v303 = vperm.slane %v301, 0
        %v304 = vperm.slane %v301, 1
        %v307 = vmul.f32 %v299, %v303
        %v308 = vmul.f32 %v298, %v304
        %309 = vst [vmem:[#allocation2 + $0x10] sm:$0xf] %v307
        %310 = vst [vmem:[#allocation2 + $0x18] sm:$0xf] %v308
        %311 = vst [vmem:[#allocation1] ss:$2 sm:$0xff] %v233
        %v312 = vld.sshfl [vmem:[#allocation1] sm:$0xff pattern:$0x75316420]
        %v313 = vld.sshfl [vmem:[#allocation1 + $0x8] sm:$0xff pattern:$0x75316420]
        %316 = vrot.lane.b32.xlu0 %v312, 1
        %v317 = vpop.permute.xlu0 %316
        %318 = vrot.lane.b32.xlu0 %v313, 1
        %v319 = vpop.permute.xlu0 %318
        %vm320 = vcmp.lt.s32.totalorder %v245, 1
        %v321 = vsel %vm320, %v317, %v319
        %v322 = vsel %vm320, %v319, %v317
        %s323 = scalar_lea.vmem [#allocation6], 3
        %v324 = vld [vmem:[%s323] ss:$8 sm:$0x3]
        %v326 = vperm.slane %v324, 0
        %v327 = vperm.slane %v324, 1
        %v330 = vmul.f32 %v322, %v326
        %v331 = vmul.f32 %v321, %v327
        %v334 = vrot.slane %v330, 4
        %v335 = vrot.slane %v331, 4
        %338 = vst [vmem:[#allocation2 + $0x10] sm:$0xf0] %v334
        %339 = vst [vmem:[#allocation2 + $0x18] sm:$0xf0] %v335
        %s340 = scalar_lea.vmem [#allocation6], 4
        %v341 = vld [vmem:[%s340] ss:$8 sm:$0x3]
        %v343 = vperm.slane %v341, 0
        %v344 = vperm.slane %v341, 1
        %v345 = vrot.slane %v344, 4
        %vm346 = vcmask 1043456
        %v347 = vsel %vm346, %v343, %v345
        %v349 = vmul.f32 %v233, %v347
        %351 = vst [vmem:[#allocation1] ss:$2 sm:$0xff] %v349
        %v352 = vld.sshfl [vmem:[#allocation1] sm:$0xff pattern:$0x75316420]
        %v353 = vld.sshfl [vmem:[#allocation1 + $0x8] sm:$0xff pattern:$0x75316420]
        %356 = vst [vmem:[#allocation2 + $0x20] sm:$0xf] %v352
        %357 = vst [vmem:[#allocation2 + $0x28] sm:$0xf] %v353
        %358 = vst [vmem:[#allocation1] ss:$2 sm:$0xff] %v233
        %v359 = vld.sshfl [vmem:[#allocation1] sm:$0xff pattern:$0x75316420]
        %v360 = vld.sshfl [vmem:[#allocation1 + $0x8] sm:$0xff pattern:$0x75316420]
        %363 = vrot.lane.b32.xlu0 %v359, 127
        %v364 = vpop.permute.xlu0 %363
        %365 = vrot.lane.b32.xlu0 %v360, 127
        %v366 = vpop.permute.xlu0 %365
        %vm367 = vcmp.lt.s32.totalorder %v245, 127
        %v368 = vsel %vm367, %v364, %v366
        %v369 = vsel %vm367, %v366, %v364
        %s370 = scalar_lea.vmem [#allocation6], 5
        %v371 = vld [vmem:[%s370] ss:$8 sm:$0x3]
        %v373 = vperm.slane %v371, 0
        %v374 = vperm.slane %v371, 1
        %v377 = vmul.f32 %v368, %v373
        %v378 = vmul.f32 %v369, %v374
        %v381 = vrot.slane %v377, 4
        %v382 = vrot.slane %v378, 4
        %385 = vst [vmem:[#allocation2 + $0x20] sm:$0xf0] %v381
        %386 = vst [vmem:[#allocation2 + $0x28] sm:$0xf0] %v382
        %387 = vst [vmem:[#allocation1] ss:$2 sm:$0xff] %v233
        %v388 = vld.sshfl [vmem:[#allocation1] sm:$0xff pattern:$0x75316420]
        %v389 = vld.sshfl [vmem:[#allocation1 + $0x8] sm:$0xff pattern:$0x75316420]
        %392 = vrot.lane.b32.xlu0 %v388, 113
        %v393 = vpop.permute.xlu0 %392
        %394 = vrot.lane.b32.xlu0 %v389, 113
        %v395 = vpop.permute.xlu0 %394
        %vm396 = vcmp.lt.s32.totalorder %v245, 113
        %v397 = vsel %vm396, %v393, %v395
        %v398 = vsel %vm396, %v395, %v393
        %s399 = scalar_lea.vmem [#allocation6], 6
        %v400 = vld [vmem:[%s399] ss:$8 sm:$0x3]
        %v402 = vperm.slane %v400, 0
        %v403 = vperm.slane %v400, 1
        %v406 = vmul.f32 %v397, %v402
        %v407 = vmul.f32 %v398, %v403
        %408 = vst [vmem:[#allocation2 + $0x30] sm:$0xf] %v406
        %409 = vst [vmem:[#allocation2 + $0x38] sm:$0xf] %v407
        %410 = vst [vmem:[#allocation1] ss:$2 sm:$0xff] %v233
        %v411 = vld.sshfl [vmem:[#allocation1] sm:$0xff pattern:$0x75316420]
        %v412 = vld.sshfl [vmem:[#allocation1 + $0x8] sm:$0xff pattern:$0x75316420]
        %415 = vrot.lane.b32.xlu0 %v411, 112
        %v416 = vpop.permute.xlu0 %415
        %417 = vrot.lane.b32.xlu0 %v412, 112
        %v418 = vpop.permute.xlu0 %417
        %vm419 = vcmp.lt.s32.totalorder %v245, 112
        %v420 = vsel %vm419, %v416, %v418
        %v421 = vsel %vm419, %v418, %v416
        %s422 = scalar_lea.vmem [#allocation6], 7
        %v423 = vld [vmem:[%s422] ss:$8 sm:$0x3]
        %v425 = vperm.slane %v423, 0
        %v426 = vperm.slane %v423, 1
        %v429 = vmul.f32 %v420, %v425
        %v430 = vmul.f32 %v421, %v426
        %v433 = vrot.slane %v429, 4
        %v434 = vrot.slane %v430, 4
        %437 = vst [vmem:[#allocation2 + $0x30] sm:$0xf0] %v433
        %438 = vst [vmem:[#allocation2 + $0x38] sm:$0xf0] %v434
        %439 = vst [vmem:[#allocation1] ss:$2 sm:$0xff] %v233
        %v440 = vld.sshfl [vmem:[#allocation1] sm:$0xff pattern:$0x75316420]
        %v441 = vld.sshfl [vmem:[#allocation1 + $0x8] sm:$0xff pattern:$0x75316420]
        %444 = vrot.lane.b32.xlu0 %v440, 111
        %v445 = vpop.permute.xlu0 %444
        %446 = vrot.lane.b32.xlu0 %v441, 111
        %v447 = vpop.permute.xlu0 %446
        %vm448 = vcmp.lt.s32.totalorder %v245, 111
        %v449 = vsel %vm448, %v445, %v447
        %v450 = vsel %vm448, %v447, %v445
        %s451 = scalar_lea.vmem [#allocation6], 16
        %v452 = vld [vmem:[%s451] ss:$8 sm:$0x3]
        %v454 = vperm.slane %v452, 0
        %v455 = vperm.slane %v452, 1
        %v458 = vmul.f32 %v449, %v454
        %v459 = vmul.f32 %v450, %v455
        %460 = vst [vmem:[#allocation2 + $0x40] sm:$0xf] %v458
        %461 = vst [vmem:[#allocation2 + $0x48] sm:$0xf] %v459
        %v462 = vld [vmem:[%s1] sm:$0xff]
        %v463 = vld [vmem:[#allocation2] sm:$0xff]
        %v464 = vld [vmem:[#allocation2 + $0x8] sm:$0xff]
        %v465 = vld [vmem:[#allocation2 + $0x10] sm:$0xff]
        %v466 = vld [vmem:[#allocation2 + $0x18] sm:$0xff]
        %v467 = vld [vmem:[#allocation2 + $0x20] sm:$0xff]
        %v468 = vld [vmem:[#allocation2 + $0x28] sm:$0xff]
        %v469 = vld [vmem:[#allocation2 + $0x30] sm:$0xff]
        %v470 = vld [vmem:[#allocation2 + $0x38] sm:$0xff]
        %v471 = vld [vmem:[#allocation2 + $0x40] sm:$0xf]
        %v472 = vld [vmem:[#allocation2 + $0x48] sm:$0xf]
        %v473 = vld [vmem:[%s2] sm:$0xff]
        %475 = vset.pattern.permute.xlu0 0
        %476 = vperm.xlu0 %475, %v473
        %v477 = vpop.permute.xlu0 %476
        %vm479 = vcmask 293888
        %v481 = vsel %vm479, %v462, 0
        %v484 = vsel %vm346, %v471, 0
        %v487 = vsel %vm346, %v472, 0
        %489 = vmatpush.msra.mxu0 0.0
        %490 = vmatpush.msra.mxu0 0.0
        %491 = vmatpush.msra.mxu0 0.0
        %492 = vmatpush.msra.mxu0 0.0
        %493 = vmatpush.msra.mxu0 0.0
        %494 = vmatpush.msra.mxu0 0.0
        %495 = vmatpush.msra.mxu0 0.0
        %496 = vmatpush.msra.mxu0 0.0
        %497 = vmatpush.msra.mxu0 0.0
        %498 = vmatpush.msra.mxu0 0.0
        %499 = vmatpush.msra.mxu0 0.0
        %500 = vmatpush.msra.mxu0 %v484
        %501 = vmatpush.msra.mxu0 %v469
        %502 = vmatpush.msra.mxu0 %v467
        %503 = vmatpush.msra.mxu0 %v465
        %504 = vmatpush.msra.mxu0 %v463
        %505 = vmatmul.f32.gmra.mxu0 %v481
        %v506 = vpop.f32.mrf.mxu0
        %v507 = vadd.f32 %v477, %v506
        %508 = vdwg.mxu0
        %509 = vmatpush.msra.mxu0 0.0
        %510 = vmatpush.msra.mxu0 0.0
        %511 = vmatpush.msra.mxu0 0.0
        %512 = vmatpush.msra.mxu0 0.0
        %513 = vmatpush.msra.mxu0 0.0
        %514 = vmatpush.msra.mxu0 0.0
        %515 = vmatpush.msra.mxu0 0.0
        %516 = vmatpush.msra.mxu0 0.0
        %517 = vmatpush.msra.mxu0 0.0
        %518 = vmatpush.msra.mxu0 0.0
        %519 = vmatpush.msra.mxu0 0.0
        %520 = vmatpush.msra.mxu0 %v487
        %521 = vmatpush.msra.mxu0 %v470
        %522 = vmatpush.msra.mxu0 %v468
        %523 = vmatpush.msra.mxu0 %v466
        %524 = vmatpush.msra.mxu0 %v464
        %525 = vmatmul.f32.gmra.mxu0 %v481
        %v526 = vpop.f32.mrf.mxu0
        %v527 = vadd.f32 %v477, %v526
        %528 = vdwg.mxu0
        %v529 = vmax.f32 %v507, 0.0
        %v530 = vmax.f32 %v527, 0.0
        %531 = vst [vmem:[%s232] sm:$0xff] %v529
        %532 = vst [vmem:[%s232 + $0x8] sm:$0xff] %v530
        %s533 = sand.u32 %s119, 1
        %s534 = scalar_lea.sflag [#allocation5], %s533
        %s535 = sand.u32 %s119, 1
        %s536 = smul.addr %s535, 16
        %s537 = scalar_lea.vmem [#allocation8], %s536
        // Predicated region
        $region45: #{tpu_custom_call.1} parent=35 // pred_check
          %p538 = pneg %p129
        $region46: #{tpu_custom_call.1} parent=35 // pred_check_branch
          %540 = sbr.rel (%p538) target = $region48
        $region47: #{tpu_custom_call.1} parent=35 // pred_region
          %542 = vsyncadd %s534, 0
          %s543 = smul.addr %s22, 2
          %s544 = smul.addr %s543, 8
          %s545 = scalar_lea.hbm %s4, %s544
          %s547 = sshll.u32 %s537, 4
          %s548 = int_to_ptr.vmem [resolvable:$true] %s547
          %s549 = sshll.u32 %s545, 4
          %s550 = int_to_ptr.hbm [resolvable:$true] %s549
          %552 = dma.vmem_to_hbm [thread:$0]  %s548, 256, %s550, %s534
        $region48: #{tpu_custom_call.1} parent=35 // pred_fallthru
          _
      $region36: #{tpu_custom_call.1} parent=5 // pred_fallthru
        _
      %p553 = scmp.le.s32.totalorder 2, %s17
      // Predicated region
      $region49: #{tpu_custom_call.1} parent=5 // pred_check
        %p554 = pneg %p553
      $region50: #{tpu_custom_call.1} parent=5 // pred_check_branch
        %556 = sbr.rel (%p554) target = $region52
      $region51: #{tpu_custom_call.1} parent=5 // pred_region
        %s557 = ssub.s32 %s17, 2
        // Predicated region
        $region53: #{tpu_custom_call.1} parent=51 // pred_check
          %p558 = pneg %p135
        $region54: #{tpu_custom_call.1} parent=51 // pred_check_branch
          %560 = sbr.rel (%p558) target = $region56
        $region55: #{tpu_custom_call.1} parent=51 // pred_region
          %s561 = sand.u32 %s120, 1
          %s562 = scalar_lea.sflag [#allocation5], %s561
          %s563 = sand.u32 %s120, 1
          %s564 = smul.addr %s563, 16
          %s565 = scalar_lea.vmem [#allocation8], %s564
          %567 = dma.done %s562, 256
        $region56: #{tpu_custom_call.1} parent=51 // pred_fallthru
          _
      $region52: #{tpu_custom_call.1} parent=5 // pred_fallthru
        _
    $region6: #{tpu_custom_call.1} parent=1 // loop_footer
      %s21 = sadd.s32 1, %s17
    $region7: #{tpu_custom_call.1} parent=1 // loop_footer_branch
      %16 = sbr.rel target = $region3
    $region8: #{tpu_custom_call.1} parent=1 // loop_exit
      _
    %568 = vsyncpa [#allocation4], 1
    %s569 = scalar_lea.sflag [#allocation4], 1
    %570 = vsyncpa %s569, 1
    %571 = vsyncpa [#allocation7], 1
    %572 = vsyncpa [#allocation5], 1
    %s573 = scalar_lea.sflag [#allocation5], 1
    %574 = vsyncpa %s573, 1

</llo_original>
